<compile_context>
chip_gen: v7x
topology: tpu7x:2x2x1
jax: 0.10.0
libtpu: 0.0.40
codegen_flags: <defaults>
</compile_context>

<pallas_src>
import functools

import jax
import jax.numpy as jnp
from jax import lax
from jax.experimental import pallas as pl
from jax.experimental.pallas import tpu as pltpu

INPUT_SIZE = 4       # iris features (columns 1:5 of train.tsv)
HIDDEN_SIZE = 30
OUTPUT_SIZE = 1

LANES = 128
PACK = LANES // INPUT_SIZE          # 32 batch rows packed per 128-lane line
HIDDEN_PAD = 32                     # per-row hidden padded 30 -> 32 (MXU friendly)
BIG_H = PACK * HIDDEN_PAD           # 1024 (multiple of 256)

DEFAULT_BLOCK_PACKED_ROWS = 2048    # 65536 batch rows per grid step
CHUNK_PACKED_ROWS = 256             # inner sub-tile: bounds (chunk, 1024) f32 temp


def mlp_kernel(xp_ref, w1_ref, b1_ref, w2_ref, b2_ref, o_ref, *, chunk, n_chunks):
    # xp_ref: (TR, 128)   f32  -- 32 packed batch rows per lane line (streams)
    # w1_ref: (128, 1024) bf16 -- block-diagonal W1, VMEM resident
    # b1_ref: (1, 1024)   f32  -- b1 tiled 32x, resident
    # w2_ref: (1024, 32)  bf16 -- block-diagonal w2 column, resident
    # b2_ref: (1, 1)      f32  -- scalar bias in SMEM
    # o_ref : (TR, 32)    f32  -- y for the 32*TR batch rows of this grid step
    b1 = b1_ref[...]
    b2 = b2_ref[0, 0]

    def body(c, carry):
        r = pl.multiple_of(c * chunk, chunk)
        xb = xp_ref[pl.ds(r, chunk), :].astype(jnp.bfloat16)          # VPU cast
        h = jnp.dot(xb, w1_ref[...], preferred_element_type=jnp.float32)
        h = jnp.maximum(h + b1, 0.0)                                   # f32 bias+ReLU
        y = jnp.dot(h.astype(jnp.bfloat16), w2_ref[...],
                    preferred_element_type=jnp.float32)
        o_ref[pl.ds(r, chunk), :] = (y + b2).astype(o_ref.dtype)
        return carry

    lax.fori_loop(0, n_chunks, body, 0, unroll=True)


def prepare_params(w1, b1, w2, b2):
    """Build packed block-diagonal weights ONCE per parameter set (hoisted out
    of the per-forward hot path).  Returns (w1_big bf16, b1_big f32,
    w2_big bf16, b2 f32 (1,1))."""
    f32 = jnp.float32
    w1 = jnp.asarray(w1, f32).reshape(INPUT_SIZE, HIDDEN_SIZE)
    b1 = jnp.asarray(b1, f32).reshape(1, HIDDEN_SIZE)
    w2 = jnp.asarray(w2, f32).reshape(HIDDEN_SIZE, OUTPUT_SIZE)
    b2 = jnp.asarray(b2, f32).reshape(1, 1)

    # Pad the per-block hidden width 30 -> 32 with zeros (exactly neutral).
    w1_p = jnp.zeros((INPUT_SIZE, HIDDEN_PAD), f32).at[:, :HIDDEN_SIZE].set(w1)
    b1_p = jnp.zeros((1, HIDDEN_PAD), f32).at[:, :HIDDEN_SIZE].set(b1)
    w2_p = jnp.zeros((HIDDEN_PAD,), f32).at[:HIDDEN_SIZE].set(w2[:, 0])

    eye = jnp.eye(PACK, dtype=f32)
    # W1_big[4r+i, 32s+o] = w1_p[i, o] * (r == s)
    w1_big = jnp.einsum("rs,io->riso", eye, w1_p).reshape(PACK * INPUT_SIZE, BIG_H)
    # b1_big[0, 32s+o] = b1_p[0, o]
    b1_big = jnp.tile(b1_p, (1, PACK))
    # W2_big[32s+o, g] = w2_p[o] * (s == g)
    w2_big = jnp.einsum("sg,o->sog", eye, w2_p).reshape(BIG_H, PACK)

    return (w1_big.astype(jnp.bfloat16), b1_big, w2_big.astype(jnp.bfloat16), b2)


def linear_regression_forward(x, packed_params, *,
                              block_packed_rows=DEFAULT_BLOCK_PACKED_ROWS):
    """x: [B, 4] f32 -> [B, 1] f32 ;  y = relu(x @ w1 + b1) @ w2 + b2."""
    w1_big, b1_big, w2_big, b2_s = packed_params
    B = x.shape[0]
    x = x.astype(jnp.float32)

    # Pack x: pad only to a multiple of PACK (<= 31 rows), reshape is free.
    p = pl.cdiv(B, PACK)
    b32 = p * PACK
    if b32 != B:
        x = jnp.pad(x, ((0, b32 - B), (0, 0)))
    xp = x.reshape(p, LANES)

    # Tile selection: big tiles to amortize per-step overhead, inner chunking to
    # bound the hidden temp, >= 2 grid steps when there is enough work (v7x 2 TC).
    chunk = CHUNK_PACKED_ROWS
    if p <= chunk:
        tr = max(8, pl.cdiv(p, 8) * 8)
        chunk = tr
    else:
        tr = min(block_packed_rows, pl.cdiv(p, chunk) * chunk)
        half = pl.cdiv(pl.cdiv(p, 2), chunk) * chunk
        tr = min(tr, max(chunk, half))
    n_chunks = tr // chunk
    grid = (pl.cdiv(p, tr),)

    kernel = functools.partial(mlp_kernel, chunk=chunk, n_chunks=n_chunks)

    out_packed = pl.pallas_call(
        kernel,
        out_shape=jax.ShapeDtypeStruct((p, PACK), jnp.float32),
        grid=grid,
        in_specs=[
            pl.BlockSpec((tr, LANES), lambda i: (i, 0)),                 # x streams
            pl.BlockSpec((PACK * INPUT_SIZE, BIG_H), lambda i: (0, 0)),  # W1_big resident
            pl.BlockSpec((1, BIG_H), lambda i: (0, 0)),                  # b1_big resident
            pl.BlockSpec((BIG_H, PACK), lambda i: (0, 0)),               # W2_big resident
            pl.BlockSpec(memory_space=pltpu.MemorySpace.SMEM),           # b2 scalar
        ],
        out_specs=pl.BlockSpec((tr, PACK), lambda i: (i, 0)),
        compiler_params=pltpu.CompilerParams(
            # batch grid axis is independent -> shard over v7x's 2 TensorCores
            dimension_semantics=("parallel",),
        ),
    )(xp, w1_big, b1_big, w2_big, b2_s)

    # Unpack: out_packed[q, g] is y for batch row 32*q + g (row-major flatten).
    return out_packed.reshape(b32)[:B].reshape(B, OUTPUT_SIZE)


def init_params(key):
    """Deterministic init mimicking nn.Linear default (uniform +/- 1/sqrt(fan_in))."""
    k1, k2, k3, k4 = jax.random.split(key, 4)
    bound1 = 1.0 / jnp.sqrt(jnp.float32(INPUT_SIZE))
    bound2 = 1.0 / jnp.sqrt(jnp.float32(HIDDEN_SIZE))
    # stored already transposed to [in, out] for the kernel
    w1 = jax.random.uniform(k1, (INPUT_SIZE, HIDDEN_SIZE), jnp.float32, -bound1, bound1)
    b1 = jax.random.uniform(k2, (1, HIDDEN_SIZE), jnp.float32, -bound1, bound1)
    w2 = jax.random.uniform(k3, (HIDDEN_SIZE, OUTPUT_SIZE), jnp.float32, -bound2, bound2)
    b2 = jax.random.uniform(k4, (1, OUTPUT_SIZE), jnp.float32, -bound2, bound2)
    return w1, b1, w2, b2


if __name__ == "__main__":
    key = jax.random.PRNGKey(0)
    kx, kp = jax.random.split(key)
    w1, b1, w2, b2 = init_params(kp)
    packed = prepare_params(w1, b1, w2, b2)   # hoisted: done once per param set

    def ref_fn(xx):
        return jnp.maximum(xx @ w1 + b1, 0.0) @ w2 + b2

    # Small example at module-implied shapes (batch of 4-feature rows).
    x_small = jax.random.normal(kx, (8, INPUT_SIZE), jnp.float32)
    out = jax.block_until_ready(linear_regression_forward(x_small, packed))
    assert out.shape == (8, OUTPUT_SIZE)
    assert jnp.allclose(out, ref_fn(x_small), atol=2e-2, rtol=2e-2), (
        float(jnp.max(jnp.abs(out - ref_fn(x_small)))))

    # Non-aligned larger batch: exercises pad-to-32, multi-step grid, the inner
    # chunk loop and the ragged (masked) last grid block.
    x_big = jax.random.normal(jax.random.PRNGKey(1), (64003, INPUT_SIZE), jnp.float32)
    out_big = jax.block_until_ready(linear_regression_forward(x_big, packed))
    assert out_big.shape == (64003, OUTPUT_SIZE)
    assert jnp.allclose(out_big, ref_fn(x_big), atol=2e-2, rtol=2e-2), (
        float(jnp.max(jnp.abs(out_big - ref_fn(x_big)))))

    print("KERNEL_OK")
</pallas_src>

<mosaic_0001>
module attributes {stable_mosaic.version = 11 : i64} {
  func.func @mlp_kernel(%arg0: i32, %arg1: memref<8x128xf32, #tpu.memory_space<vmem>>, %arg2: memref<128x1024xbf16, #tpu.memory_space<vmem>>, %arg3: memref<1x1024xf32, #tpu.memory_space<vmem>>, %arg4: memref<1024x32xbf16, #tpu.memory_space<vmem>>, %arg5: memref<1x1xf32, #tpu.memory_space<smem>>, %arg6: memref<8x32xf32, #tpu.memory_space<vmem>>) attributes {dimension_semantics = [#tpu.dimension_semantics<parallel>], iteration_bounds = array<i64: 1>, scalar_prefetch = 0 : i64, scratch_operands = 0 : i64, tpu.core_type = #tpu.core_type<tc>, window_params = [{transform_indices = @transform_0, window_bounds = array<i64: 8, 128>}, {pipeline_mode = #tpu.pipeline_mode<synchronous>, transform_indices = @transform_1, window_bounds = array<i64: 128, 1024>}, {pipeline_mode = #tpu.pipeline_mode<synchronous>, transform_indices = @transform_2, window_bounds = array<i64: 1, 1024>}, {pipeline_mode = #tpu.pipeline_mode<synchronous>, transform_indices = @transform_3, window_bounds = array<i64: 1024, 32>}, {transform_indices = @transform_4, window_bounds = array<i64: 1, 1>}, {transform_indices = @transform_5, window_bounds = array<i64: 8, 32>}]} {
    %c0 = arith.constant 0 : index
    %c0_0 = arith.constant 0 : index
    %0 = vector.load %arg3[%c0, %c0_0] : memref<1x1024xf32, #tpu.memory_space<vmem>>, vector<1x1024xf32>
    %c0_1 = arith.constant 0 : index
    %c0_2 = arith.constant 0 : index
    %1 = memref.load %arg5[%c0_1, %c0_2] : memref<1x1xf32, #tpu.memory_space<smem>>
    %c0_i32 = arith.constant 0 : i32
    %c8_i32 = arith.constant 8 : i32
    %2 = arith.muli %c0_i32, %c8_i32 : i32
    %3 = tpu.assume_multiple %2, 8 : i32
    %4 = arith.index_cast %3 : i32 to index
    %c0_3 = arith.constant 0 : index
    %5 = vector.load %arg1[%4, %c0_3] : memref<8x128xf32, #tpu.memory_space<vmem>>, vector<8x128xf32>
    %6 = arith.truncf %5 : vector<8x128xf32> to vector<8x128xbf16>
    %c0_4 = arith.constant 0 : index
    %c0_5 = arith.constant 0 : index
    %7 = vector.load %arg2[%c0_4, %c0_5] : memref<128x1024xbf16, #tpu.memory_space<vmem>>, vector<128x1024xbf16>
    %cst = arith.constant dense<0.000000e+00> : vector<8x1024xf32>
    %8 = tpu.matmul %6, %7, %cst {dimension_numbers = #tpu.dot_dimension_numbers<[1], [0], [0], [1], [0, 0, 1, 1], [], []>} : vector<8x128xbf16>, vector<128x1024xbf16>, vector<8x1024xf32> -> vector<8x1024xf32>
    %9 = vector.broadcast %0 : vector<1x1024xf32> to vector<8x1024xf32>
    %10 = arith.addf %8, %9 : vector<8x1024xf32>
    %cst_6 = arith.constant 0.000000e+00 : f32
    %11 = vector.broadcast %cst_6 : f32 to vector<8x1024xf32>
    %12 = arith.maximumf %10, %11 : vector<8x1024xf32>
    %13 = arith.truncf %12 : vector<8x1024xf32> to vector<8x1024xbf16>
    %c0_7 = arith.constant 0 : index
    %c0_8 = arith.constant 0 : index
    %14 = vector.load %arg4[%c0_7, %c0_8] : memref<1024x32xbf16, #tpu.memory_space<vmem>>, vector<1024x32xbf16>
    %cst_9 = arith.constant dense<0.000000e+00> : vector<8x32xf32>
    %15 = tpu.matmul %13, %14, %cst_9 {dimension_numbers = #tpu.dot_dimension_numbers<[1], [0], [0], [1], [0, 0, 1, 1], [], []>} : vector<8x1024xbf16>, vector<1024x32xbf16>, vector<8x32xf32> -> vector<8x32xf32>
    %16 = vector.broadcast %1 : f32 to vector<8x32xf32>
    %17 = arith.addf %15, %16 : vector<8x32xf32>
    %18 = arith.index_cast %3 : i32 to index
    %c0_10 = arith.constant 0 : index
    %19 = vector.load %arg6[%18, %c0_10] : memref<8x32xf32, #tpu.memory_space<vmem>>, vector<8x32xf32>
    tpu.vector_store %arg6[%18, %c0_10], %17 {strides = array<i32>} : memref<8x32xf32, #tpu.memory_space<vmem>>, vector<8x32xf32>,
    %c1_i32 = arith.constant 1 : i32
    return
  }
  func.func @transform_0(%arg0: i32) -> (i32, i32) {
    %c0_i32 = arith.constant 0 : i32
    %c0_i32_0 = arith.constant 0 : i32
    return %arg0, %c0_i32 : i32, i32
  }
  func.func @transform_1(%arg0: i32) -> (i32, i32) {
    %c0_i32 = arith.constant 0 : i32
    %c0_i32_0 = arith.constant 0 : i32
    %c0_i32_1 = arith.constant 0 : i32
    return %c0_i32, %c0_i32_0 : i32, i32
  }
  func.func @transform_2(%arg0: i32) -> (i32, i32) {
    %c0_i32 = arith.constant 0 : i32
    %c0_i32_0 = arith.constant 0 : i32
    %c0_i32_1 = arith.constant 0 : i32
    return %c0_i32, %c0_i32_0 : i32, i32
  }
  func.func @transform_3(%arg0: i32) -> (i32, i32) {
    %c0_i32 = arith.constant 0 : i32
    %c0_i32_0 = arith.constant 0 : i32
    %c0_i32_1 = arith.constant 0 : i32
    return %c0_i32, %c0_i32_0 : i32, i32
  }
  func.func @transform_4(%arg0: i32) -> (i32, i32) {
    %c0_i32 = arith.constant 0 : i32
    %c0_i32_0 = arith.constant 0 : i32
    %c0_i32_1 = arith.constant 0 : i32
    return %c0_i32, %c0_i32_0 : i32, i32
  }
  func.func @transform_5(%arg0: i32) -> (i32, i32) {
    %c0_i32 = arith.constant 0 : i32
    %c0_i32_0 = arith.constant 0 : i32
    return %arg0, %c0_i32 : i32, i32
  }
}

</mosaic_0001>

<llo_original>
// kernel: tpu_custom_call.1
$region0: #{tpu_custom_call.1}
  #allocation0 [shape = 'u32[]', space=smem, size = 0x4, offset = 0x4, fixed_abs, tag = 'smem constant byte address 0x4 - core index']
  #allocation1 [shape = 'u32[144,128]{1,0:T(1,128)}', space=vmem, size = 0x12000, scoped, tag = 'internal scratch']
  #allocation2 [shape = 'f32[1,1]{1,0:T(1,128)S(6)}', space=smem, size = 0x200, scoped, tag = 'scoped memory for tpu_custom_call.1']
  %s0 = inlined_call_operand.vmem [shape: f32[1,128], index: 0, kind: input, shape index: {}]
  %s1 = inlined_call_operand.vmem [shape: bf16[128,1024], index: 1, kind: input, shape index: {}]
  %s2 = inlined_call_operand.vmem [shape: f32[1,1024], index: 2, kind: input, shape index: {}]
  %s3 = inlined_call_operand.vmem [shape: bf16[1024,32], index: 3, kind: input, shape index: {}]
  %s4 = inlined_call_operand.<no memory space> [shape: f32[1,1], index: 4, kind: input, shape index: {}]
  %s5 = inlined_call_operand.hbm [shape: f32[1,32], index: 5, kind: output, shape index: {}]
  %s6 = sld [smem:[#allocation0]]
  $region30: #{tpu_custom_call.1} parent=0
    _
  %s8 = ssub.s32 1, %s6
  %s9 = scalar_select 0, %s8, %s6
  %10 = sst [smem:[#allocation2]] %s4
  $region1: #{tpu_custom_call.1} parent=0
    #allocation3 [shape = 'u8[4096]{0}', space=vmem, size = 0x1000, scoped, tag = 'output window, operand 0, single buffered']
    #allocation4 [shape = 's32[1]{0}', space=sflag, size = 0x4, scoped, tag = 'scoped memory for tpu_custom_call.1']
    %11 = vsyncpa [#allocation4], 0
    // Predicated region
    $region2: #{tpu_custom_call.1} parent=1 // pred_check
      _
    $region3: #{tpu_custom_call.1} parent=1 // pred_check_branch
      %13 = sbr.rel (0) target = $region5
    $region4: #{tpu_custom_call.1} parent=1 // pred_region
      _
    $region5: #{tpu_custom_call.1} parent=1 // pred_fallthru
      _
    // Predicated region
    $region6: #{tpu_custom_call.1} parent=1 // pred_check
      _
    $region7: #{tpu_custom_call.1} parent=1 // pred_check_branch
      %15 = sbr.rel (0) target = $region9
    $region8: #{tpu_custom_call.1} parent=1 // pred_region
      _
    $region9: #{tpu_custom_call.1} parent=1 // pred_fallthru
      _
    // Predicated region
    $region10: #{tpu_custom_call.1} parent=1 // pred_check
      _
    $region11: #{tpu_custom_call.1} parent=1 // pred_check_branch
      %17 = sbr.rel (0) target = $region13
    $region12: #{tpu_custom_call.1} parent=1 // pred_region
      _
    $region13: #{tpu_custom_call.1} parent=1 // pred_fallthru
      _
    // Predicated region
    $region14: #{tpu_custom_call.1} parent=1 // pred_check
      _
    $region15: #{tpu_custom_call.1} parent=1 // pred_check_branch
      %19 = sbr.rel (0) target = $region17
    $region16: #{tpu_custom_call.1} parent=1 // pred_region
      _
    $region17: #{tpu_custom_call.1} parent=1 // pred_fallthru
      _
    // Predicated region
    $region18: #{tpu_custom_call.1} parent=1 // pred_check
      _
    $region19: #{tpu_custom_call.1} parent=1 // pred_check_branch
      %21 = sbr.rel (0) target = $region21
    $region20: #{tpu_custom_call.1} parent=1 // pred_region
      _
    $region21: #{tpu_custom_call.1} parent=1 // pred_fallthru
      _
    %v23 = vld [vmem:[%s2] sm:$0xff]
    %s24 = sld [smem:[#allocation2]]
    %v25 = vld [vmem:[%s0] sm:$0xff]
    %v26 = vpack.c.bf16 %v25, %v25
    %v27 = vld [vmem:[%s1] sm:$0xff]
    %v28 = vld [vmem:[%s1 + $0x8] sm:$0xff]
    %v29 = vld [vmem:[%s1 + $0x10] sm:$0xff]
    %v30 = vld [vmem:[%s1 + $0x18] sm:$0xff]
    %v31 = vld [vmem:[%s1 + $0x20] sm:$0xff]
    %v32 = vld [vmem:[%s1 + $0x28] sm:$0xff]
    %v33 = vld [vmem:[%s1 + $0x30] sm:$0xff]
    %v34 = vld [vmem:[%s1 + $0x38] sm:$0xff]
    %v35 = vld [vmem:[%s1 + $0x40] sm:$0xff]
    %v36 = vld [vmem:[%s1 + $0x48] sm:$0xff]
    %v37 = vld [vmem:[%s1 + $0x50] sm:$0xff]
    %v38 = vld [vmem:[%s1 + $0x58] sm:$0xff]
    %v39 = vld [vmem:[%s1 + $0x60] sm:$0xff]
    %v40 = vld [vmem:[%s1 + $0x68] sm:$0xff]
    %v41 = vld [vmem:[%s1 + $0x70] sm:$0xff]
    %v42 = vld [vmem:[%s1 + $0x78] sm:$0xff]
    %v43 = vld [vmem:[%s1 + $0x80] sm:$0xff]
    %v44 = vld [vmem:[%s1 + $0x88] sm:$0xff]
    %v45 = vld [vmem:[%s1 + $0x90] sm:$0xff]
    %v46 = vld [vmem:[%s1 + $0x98] sm:$0xff]
    %v47 = vld [vmem:[%s1 + $0xa0] sm:$0xff]
    %v48 = vld [vmem:[%s1 + $0xa8] sm:$0xff]
    %v49 = vld [vmem:[%s1 + $0xb0] sm:$0xff]
    %v50 = vld [vmem:[%s1 + $0xb8] sm:$0xff]
    %v51 = vld [vmem:[%s1 + $0xc0] sm:$0xff]
    %v52 = vld [vmem:[%s1 + $0xc8] sm:$0xff]
    %v53 = vld [vmem:[%s1 + $0xd0] sm:$0xff]
    %v54 = vld [vmem:[%s1 + $0xd8] sm:$0xff]
    %v55 = vld [vmem:[%s1 + $0xe0] sm:$0xff]
    %v56 = vld [vmem:[%s1 + $0xe8] sm:$0xff]
    %v57 = vld [vmem:[%s1 + $0xf0] sm:$0xff]
    %v58 = vld [vmem:[%s1 + $0xf8] sm:$0xff]
    %v59 = vld [vmem:[%s1 + $0x100] sm:$0xff]
    %v60 = vld [vmem:[%s1 + $0x108] sm:$0xff]
    %v61 = vld [vmem:[%s1 + $0x110] sm:$0xff]
    %v62 = vld [vmem:[%s1 + $0x118] sm:$0xff]
    %v63 = vld [vmem:[%s1 + $0x120] sm:$0xff]
    %v64 = vld [vmem:[%s1 + $0x128] sm:$0xff]
    %v65 = vld [vmem:[%s1 + $0x130] sm:$0xff]
    %v66 = vld [vmem:[%s1 + $0x138] sm:$0xff]
    %v67 = vld [vmem:[%s1 + $0x140] sm:$0xff]
    %v68 = vld [vmem:[%s1 + $0x148] sm:$0xff]
    %v69 = vld [vmem:[%s1 + $0x150] sm:$0xff]
    %v70 = vld [vmem:[%s1 + $0x158] sm:$0xff]
    %v71 = vld [vmem:[%s1 + $0x160] sm:$0xff]
    %v72 = vld [vmem:[%s1 + $0x168] sm:$0xff]
    %v73 = vld [vmem:[%s1 + $0x170] sm:$0xff]
    %v74 = vld [vmem:[%s1 + $0x178] sm:$0xff]
    %v75 = vld [vmem:[%s1 + $0x180] sm:$0xff]
    %v76 = vld [vmem:[%s1 + $0x188] sm:$0xff]
    %v77 = vld [vmem:[%s1 + $0x190] sm:$0xff]
    %v78 = vld [vmem:[%s1 + $0x198] sm:$0xff]
    %v79 = vld [vmem:[%s1 + $0x1a0] sm:$0xff]
    %v80 = vld [vmem:[%s1 + $0x1a8] sm:$0xff]
    %v81 = vld [vmem:[%s1 + $0x1b0] sm:$0xff]
    %v82 = vld [vmem:[%s1 + $0x1b8] sm:$0xff]
    %v83 = vld [vmem:[%s1 + $0x1c0] sm:$0xff]
    %v84 = vld [vmem:[%s1 + $0x1c8] sm:$0xff]
    %v85 = vld [vmem:[%s1 + $0x1d0] sm:$0xff]
    %v86 = vld [vmem:[%s1 + $0x1d8] sm:$0xff]
    %v87 = vld [vmem:[%s1 + $0x1e0] sm:$0xff]
    %v88 = vld [vmem:[%s1 + $0x1e8] sm:$0xff]
    %v89 = vld [vmem:[%s1 + $0x1f0] sm:$0xff]
    %v90 = vld [vmem:[%s1 + $0x1f8] sm:$0xff]
    %v92 = vlaneseq
    %v93 = vshrl.u32 %v92, 7
    %v94 = vsub.s32 0, %v93
    %v95 = vrot.slane %v23, %v94
    %v96 = vlaneseq
    %v97 = vshrl.u32 %v96, 7
    %v98 = vsub.s32 1, %v97
    %v99 = vrot.slane %v23, %v98
    %v100 = vlaneseq
    %v101 = vshrl.u32 %v100, 7
    %v102 = vsub.s32 2, %v101
    %v103 = vrot.slane %v23, %v102
    %v104 = vlaneseq
    %v105 = vshrl.u32 %v104, 7
    %v106 = vsub.s32 3, %v105
    %v107 = vrot.slane %v23, %v106
    %v108 = vlaneseq
    %v109 = vshrl.u32 %v108, 7
    %v110 = vsub.s32 4, %v109
    %v111 = vrot.slane %v23, %v110
    %v112 = vlaneseq
    %v113 = vshrl.u32 %v112, 7
    %v114 = vsub.s32 5, %v113
    %v115 = vrot.slane %v23, %v114
    %v116 = vlaneseq
    %v117 = vshrl.u32 %v116, 7
    %v118 = vsub.s32 6, %v117
    %v119 = vrot.slane %v23, %v118
    %v120 = vlaneseq
    %v121 = vshrl.u32 %v120, 7
    %v122 = vsub.s32 7, %v121
    %v123 = vrot.slane %v23, %v122
    %v196 = vunpack.c.l.b16 %v27
    %v197 = vunpack.c.h.b16 %v27
    %v198 = vunpack.c.l.b16 %v28
    %v199 = vunpack.c.h.b16 %v28
    %v200 = vunpack.c.l.b16 %v29
    %v201 = vunpack.c.h.b16 %v29
    %v202 = vunpack.c.l.b16 %v30
    %v203 = vunpack.c.h.b16 %v30
    %v204 = vunpack.c.l.b16 %v31
    %v205 = vunpack.c.h.b16 %v31
    %v206 = vunpack.c.l.b16 %v32
    %v207 = vunpack.c.h.b16 %v32
    %v208 = vunpack.c.l.b16 %v33
    %v209 = vunpack.c.h.b16 %v33
    %v210 = vunpack.c.l.b16 %v34
    %v211 = vunpack.c.h.b16 %v34
    %v212 = vunpack.c.l.b16 %v35
    %v213 = vunpack.c.h.b16 %v35
    %v214 = vunpack.c.l.b16 %v36
    %v215 = vunpack.c.h.b16 %v36
    %v216 = vunpack.c.l.b16 %v37
    %v217 = vunpack.c.h.b16 %v37
    %v218 = vunpack.c.l.b16 %v38
    %v219 = vunpack.c.h.b16 %v38
    %v220 = vunpack.c.l.b16 %v39
    %v221 = vunpack.c.h.b16 %v39
    %v222 = vunpack.c.l.b16 %v40
    %v223 = vunpack.c.h.b16 %v40
    %v224 = vunpack.c.l.b16 %v41
    %v225 = vunpack.c.h.b16 %v41
    %v226 = vunpack.c.l.b16 %v42
    %v227 = vunpack.c.h.b16 %v42
    %v228 = vunpack.c.l.b16 %v43
    %v229 = vunpack.c.h.b16 %v43
    %v230 = vunpack.c.l.b16 %v44
    %v231 = vunpack.c.h.b16 %v44
    %v232 = vunpack.c.l.b16 %v45
    %v233 = vunpack.c.h.b16 %v45
    %v234 = vunpack.c.l.b16 %v46
    %v235 = vunpack.c.h.b16 %v46
    %v236 = vunpack.c.l.b16 %v47
    %v237 = vunpack.c.h.b16 %v47
    %v238 = vunpack.c.l.b16 %v48
    %v239 = vunpack.c.h.b16 %v48
    %v240 = vunpack.c.l.b16 %v49
    %v241 = vunpack.c.h.b16 %v49
    %v242 = vunpack.c.l.b16 %v50
    %v243 = vunpack.c.h.b16 %v50
    %v244 = vunpack.c.l.b16 %v51
    %v245 = vunpack.c.h.b16 %v51
    %v246 = vunpack.c.l.b16 %v52
    %v247 = vunpack.c.h.b16 %v52
    %v248 = vunpack.c.l.b16 %v53
    %v249 = vunpack.c.h.b16 %v53
    %v250 = vunpack.c.l.b16 %v54
    %v251 = vunpack.c.h.b16 %v54
    %v252 = vunpack.c.l.b16 %v55
    %v253 = vunpack.c.h.b16 %v55
    %v254 = vunpack.c.l.b16 %v56
    %v255 = vunpack.c.h.b16 %v56
    %v256 = vunpack.c.l.b16 %v57
    %v257 = vunpack.c.h.b16 %v57
    %v258 = vunpack.c.l.b16 %v58
    %v259 = vunpack.c.h.b16 %v58
    %v260 = vunpack.c.l.b16 %v59
    %v261 = vunpack.c.h.b16 %v59
    %v262 = vunpack.c.l.b16 %v60
    %v263 = vunpack.c.h.b16 %v60
    %v264 = vunpack.c.l.b16 %v61
    %v265 = vunpack.c.h.b16 %v61
    %v266 = vunpack.c.l.b16 %v62
    %v267 = vunpack.c.h.b16 %v62
    %v268 = vunpack.c.l.b16 %v63
    %v269 = vunpack.c.h.b16 %v63
    %v270 = vunpack.c.l.b16 %v64
    %v271 = vunpack.c.h.b16 %v64
    %v272 = vunpack.c.l.b16 %v65
    %v273 = vunpack.c.h.b16 %v65
    %v274 = vunpack.c.l.b16 %v66
    %v275 = vunpack.c.h.b16 %v66
    %v276 = vunpack.c.l.b16 %v67
    %v277 = vunpack.c.h.b16 %v67
    %v278 = vunpack.c.l.b16 %v68
    %v279 = vunpack.c.h.b16 %v68
    %v280 = vunpack.c.l.b16 %v69
    %v281 = vunpack.c.h.b16 %v69
    %v282 = vunpack.c.l.b16 %v70
    %v283 = vunpack.c.h.b16 %v70
    %v284 = vunpack.c.l.b16 %v71
    %v285 = vunpack.c.h.b16 %v71
    %v286 = vunpack.c.l.b16 %v72
    %v287 = vunpack.c.h.b16 %v72
    %v288 = vunpack.c.l.b16 %v73
    %v289 = vunpack.c.h.b16 %v73
    %v290 = vunpack.c.l.b16 %v74
    %v291 = vunpack.c.h.b16 %v74
    %v292 = vunpack.c.l.b16 %v75
    %v293 = vunpack.c.h.b16 %v75
    %v294 = vunpack.c.l.b16 %v76
    %v295 = vunpack.c.h.b16 %v76
    %v296 = vunpack.c.l.b16 %v77
    %v297 = vunpack.c.h.b16 %v77
    %v298 = vunpack.c.l.b16 %v78
    %v299 = vunpack.c.h.b16 %v78
    %v300 = vunpack.c.l.b16 %v79
    %v301 = vunpack.c.h.b16 %v79
    %v302 = vunpack.c.l.b16 %v80
    %v303 = vunpack.c.h.b16 %v80
    %v304 = vunpack.c.l.b16 %v81
    %v305 = vunpack.c.h.b16 %v81
    %v306 = vunpack.c.l.b16 %v82
    %v307 = vunpack.c.h.b16 %v82
    %v308 = vunpack.c.l.b16 %v83
    %v309 = vunpack.c.h.b16 %v83
    %v310 = vunpack.c.l.b16 %v84
    %v311 = vunpack.c.h.b16 %v84
    %v312 = vunpack.c.l.b16 %v85
    %v313 = vunpack.c.h.b16 %v85
    %v314 = vunpack.c.l.b16 %v86
    %v315 = vunpack.c.h.b16 %v86
    %v316 = vunpack.c.l.b16 %v87
    %v317 = vunpack.c.h.b16 %v87
    %v318 = vunpack.c.l.b16 %v88
    %v319 = vunpack.c.h.b16 %v88
    %v320 = vunpack.c.l.b16 %v89
    %v321 = vunpack.c.h.b16 %v89
    %v322 = vunpack.c.l.b16 %v90
    %v323 = vunpack.c.h.b16 %v90
    %v324 = vpack.c.b16 %v204, %v196
    %v325 = vpack.c.b16 %v205, %v197
    %v326 = vpack.c.b16 %v206, %v198
    %v327 = vpack.c.b16 %v207, %v199
    %v328 = vpack.c.b16 %v208, %v200
    %v329 = vpack.c.b16 %v209, %v201
    %v330 = vpack.c.b16 %v210, %v202
    %v331 = vpack.c.b16 %v211, %v203
    %v332 = vpack.c.b16 %v220, %v212
    %v333 = vpack.c.b16 %v221, %v213
    %v334 = vpack.c.b16 %v222, %v214
    %v335 = vpack.c.b16 %v223, %v215
    %v336 = vpack.c.b16 %v224, %v216
    %v337 = vpack.c.b16 %v225, %v217
    %v338 = vpack.c.b16 %v226, %v218
    %v339 = vpack.c.b16 %v227, %v219
    %v340 = vpack.c.b16 %v236, %v228
    %v341 = vpack.c.b16 %v237, %v229
    %v342 = vpack.c.b16 %v238, %v230
    %v343 = vpack.c.b16 %v239, %v231
    %v344 = vpack.c.b16 %v240, %v232
    %v345 = vpack.c.b16 %v241, %v233
    %v346 = vpack.c.b16 %v242, %v234
    %v347 = vpack.c.b16 %v243, %v235
    %v348 = vpack.c.b16 %v252, %v244
    %v349 = vpack.c.b16 %v253, %v245
    %v350 = vpack.c.b16 %v254, %v246
    %v351 = vpack.c.b16 %v255, %v247
    %v352 = vpack.c.b16 %v256, %v248
    %v353 = vpack.c.b16 %v257, %v249
    %v354 = vpack.c.b16 %v258, %v250
    %v355 = vpack.c.b16 %v259, %v251
    %v356 = vpack.c.b16 %v268, %v260
    %v357 = vpack.c.b16 %v269, %v261
    %v358 = vpack.c.b16 %v270, %v262
    %v359 = vpack.c.b16 %v271, %v263
    %v360 = vpack.c.b16 %v272, %v264
    %v361 = vpack.c.b16 %v273, %v265
    %v362 = vpack.c.b16 %v274, %v266
    %v363 = vpack.c.b16 %v275, %v267
    %v364 = vpack.c.b16 %v284, %v276
    %v365 = vpack.c.b16 %v285, %v277
    %v366 = vpack.c.b16 %v286, %v278
    %v367 = vpack.c.b16 %v287, %v279
    %v368 = vpack.c.b16 %v288, %v280
    %v369 = vpack.c.b16 %v289, %v281
    %v370 = vpack.c.b16 %v290, %v282
    %v371 = vpack.c.b16 %v291, %v283
    %v372 = vpack.c.b16 %v300, %v292
    %v373 = vpack.c.b16 %v301, %v293
    %v374 = vpack.c.b16 %v302, %v294
    %v375 = vpack.c.b16 %v303, %v295
    %v376 = vpack.c.b16 %v304, %v296
    %v377 = vpack.c.b16 %v305, %v297
    %v378 = vpack.c.b16 %v306, %v298
    %v379 = vpack.c.b16 %v307, %v299
    %v380 = vpack.c.b16 %v316, %v308
    %v381 = vpack.c.b16 %v317, %v309
    %v382 = vpack.c.b16 %v318, %v310
    %v383 = vpack.c.b16 %v319, %v311
    %v384 = vpack.c.b16 %v320, %v312
    %v385 = vpack.c.b16 %v321, %v313
    %v386 = vpack.c.b16 %v322, %v314
    %v387 = vpack.c.b16 %v323, %v315
    %452 = vmatprep.subr.bf16.mxu0 %v325
    %453 = vmatpush1.bf16.msra.mxu0 %v324
    %454 = vmatprep.subr.bf16.mxu0 %v333
    %455 = vmatpush1.bf16.msra.mxu0 %v332
    %456 = vmatprep.subr.bf16.mxu0 %v341
    %457 = vmatpush1.bf16.msra.mxu0 %v340
    %458 = vmatprep.subr.bf16.mxu0 %v349
    %459 = vmatpush1.bf16.msra.mxu0 %v348
    %460 = vmatprep.subr.bf16.mxu0 %v357
    %461 = vmatpush1.bf16.msra.mxu0 %v356
    %462 = vmatprep.subr.bf16.mxu0 %v365
    %463 = vmatpush1.bf16.msra.mxu0 %v364
    %464 = vmatprep.subr.bf16.mxu0 %v373
    %465 = vmatpush1.bf16.msra.mxu0 %v372
    %466 = vmatprep.subr.bf16.mxu0 %v381
    %467 = vmatpush1.bf16.msra.mxu0 %v380
    %468 = vmatprep.subr.bf16.mxu0 0
    %469 = vmatpush1.bf16.msra.mxu0 0
    %470 = vmatprep.subr.bf16.mxu0 0
    %471 = vmatpush1.bf16.msra.mxu0 0
    %472 = vmatprep.subr.bf16.mxu0 0
    %473 = vmatpush1.bf16.msra.mxu0 0
    %474 = vmatprep.subr.bf16.mxu0 0
    %475 = vmatpush1.bf16.msra.mxu0 0
    %476 = vmatprep.subr.bf16.mxu0 0
    %477 = vmatpush1.bf16.msra.mxu0 0
    %478 = vmatprep.subr.bf16.mxu0 0
    %479 = vmatpush1.bf16.msra.mxu0 0
    %480 = vmatprep.subr.bf16.mxu0 0
    %481 = vmatpush1.bf16.msra.mxu0 0
    %482 = vmatprep.subr.bf16.mxu0 0
    %483 = vmatpush1.bf16.msra.mxu0 0
    %484 = vmatprep.mubr.bf16.mxu0 0
    %485 = vmatmul.mubr.bf16.gmra.mrb[0].mxu0 %v26
    %v486 = vpop.f32.mrb[0].mxu0
    %v487 = vadd.f32 %v95, %v486
    %v488 = vpop.f32.mrb[0].mxu0
    %v489 = vadd.f32 %v99, %v488
    %v490 = vpop.f32.mrb[0].mxu0
    %v491 = vpop.f32.mrb[0].mxu0
    %492 = vdwg.mxu0
    %493 = vmatprep.subr.bf16.mxu0 %v327
    %494 = vmatpush1.bf16.msra.mxu0 %v326
    %495 = vmatprep.subr.bf16.mxu0 %v335
    %496 = vmatpush1.bf16.msra.mxu0 %v334
    %497 = vmatprep.subr.bf16.mxu0 %v343
    %498 = vmatpush1.bf16.msra.mxu0 %v342
    %499 = vmatprep.subr.bf16.mxu0 %v351
    %500 = vmatpush1.bf16.msra.mxu0 %v350
    %501 = vmatprep.subr.bf16.mxu0 %v359
    %502 = vmatpush1.bf16.msra.mxu0 %v358
    %503 = vmatprep.subr.bf16.mxu0 %v367
    %504 = vmatpush1.bf16.msra.mxu0 %v366
    %505 = vmatprep.subr.bf16.mxu0 %v375
    %506 = vmatpush1.bf16.msra.mxu0 %v374
    %507 = vmatprep.subr.bf16.mxu0 %v383
    %508 = vmatpush1.bf16.msra.mxu0 %v382
    %509 = vmatprep.subr.bf16.mxu0 0
    %510 = vmatpush1.bf16.msra.mxu0 0
    %511 = vmatprep.subr.bf16.mxu0 0
    %512 = vmatpush1.bf16.msra.mxu0 0
    %513 = vmatprep.subr.bf16.mxu0 0
    %514 = vmatpush1.bf16.msra.mxu0 0
    %515 = vmatprep.subr.bf16.mxu0 0
    %516 = vmatpush1.bf16.msra.mxu0 0
    %517 = vmatprep.subr.bf16.mxu0 0
    %518 = vmatpush1.bf16.msra.mxu0 0
    %519 = vmatprep.subr.bf16.mxu0 0
    %520 = vmatpush1.bf16.msra.mxu0 0
    %521 = vmatprep.subr.bf16.mxu0 0
    %522 = vmatpush1.bf16.msra.mxu0 0
    %523 = vmatprep.subr.bf16.mxu0 0
    %524 = vmatpush1.bf16.msra.mxu0 0
    %525 = vmatprep.mubr.bf16.mxu0 0
    %526 = vmatmul.mubr.bf16.gmra.mrb[0].mxu0 %v26
    %v527 = vpop.f32.mrb[0].mxu0
    %v528 = vadd.f32 %v103, %v527
    %v529 = vpop.f32.mrb[0].mxu0
    %v530 = vadd.f32 %v107, %v529
    %v531 = vpop.f32.mrb[0].mxu0
    %v532 = vpop.f32.mrb[0].mxu0
    %533 = vdwg.mxu0
    %534 = vmatprep.subr.bf16.mxu0 %v329
    %535 = vmatpush1.bf16.msra.mxu0 %v328
    %536 = vmatprep.subr.bf16.mxu0 %v337
    %537 = vmatpush1.bf16.msra.mxu0 %v336
    %538 = vmatprep.subr.bf16.mxu0 %v345
    %539 = vmatpush1.bf16.msra.mxu0 %v344
    %540 = vmatprep.subr.bf16.mxu0 %v353
    %541 = vmatpush1.bf16.msra.mxu0 %v352
    %542 = vmatprep.subr.bf16.mxu0 %v361
    %543 = vmatpush1.bf16.msra.mxu0 %v360
    %544 = vmatprep.subr.bf16.mxu0 %v369
    %545 = vmatpush1.bf16.msra.mxu0 %v368
    %546 = vmatprep.subr.bf16.mxu0 %v377
    %547 = vmatpush1.bf16.msra.mxu0 %v376
    %548 = vmatprep.subr.bf16.mxu0 %v385
    %549 = vmatpush1.bf16.msra.mxu0 %v384
    %550 = vmatprep.subr.bf16.mxu0 0
    %551 = vmatpush1.bf16.msra.mxu0 0
    %552 = vmatprep.subr.bf16.mxu0 0
    %553 = vmatpush1.bf16.msra.mxu0 0
    %554 = vmatprep.subr.bf16.mxu0 0
    %555 = vmatpush1.bf16.msra.mxu0 0
    %556 = vmatprep.subr.bf16.mxu0 0
    %557 = vmatpush1.bf16.msra.mxu0 0
    %558 = vmatprep.subr.bf16.mxu0 0
    %559 = vmatpush1.bf16.msra.mxu0 0
    %560 = vmatprep.subr.bf16.mxu0 0
    %561 = vmatpush1.bf16.msra.mxu0 0
    %562 = vmatprep.subr.bf16.mxu0 0
    %563 = vmatpush1.bf16.msra.mxu0 0
    %564 = vmatprep.subr.bf16.mxu0 0
    %565 = vmatpush1.bf16.msra.mxu0 0
    %566 = vmatprep.mubr.bf16.mxu0 0
    %567 = vmatmul.mubr.bf16.gmra.mrb[0].mxu0 %v26
    %v568 = vpop.f32.mrb[0].mxu0
    %v569 = vadd.f32 %v111, %v568
    %v570 = vpop.f32.mrb[0].mxu0
    %v571 = vadd.f32 %v115, %v570
    %v572 = vpop.f32.mrb[0].mxu0
    %v573 = vpop.f32.mrb[0].mxu0
    %574 = vdwg.mxu0
    %575 = vmatprep.subr.bf16.mxu0 %v331
    %576 = vmatpush1.bf16.msra.mxu0 %v330
    %577 = vmatprep.subr.bf16.mxu0 %v339
    %578 = vmatpush1.bf16.msra.mxu0 %v338
    %579 = vmatprep.subr.bf16.mxu0 %v347
    %580 = vmatpush1.bf16.msra.mxu0 %v346
    %581 = vmatprep.subr.bf16.mxu0 %v355
    %582 = vmatpush1.bf16.msra.mxu0 %v354
    %583 = vmatprep.subr.bf16.mxu0 %v363
    %584 = vmatpush1.bf16.msra.mxu0 %v362
    %585 = vmatprep.subr.bf16.mxu0 %v371
    %586 = vmatpush1.bf16.msra.mxu0 %v370
    %587 = vmatprep.subr.bf16.mxu0 %v379
    %588 = vmatpush1.bf16.msra.mxu0 %v378
    %589 = vmatprep.subr.bf16.mxu0 %v387
    %590 = vmatpush1.bf16.msra.mxu0 %v386
    %591 = vmatprep.subr.bf16.mxu0 0
    %592 = vmatpush1.bf16.msra.mxu0 0
    %593 = vmatprep.subr.bf16.mxu0 0
    %594 = vmatpush1.bf16.msra.mxu0 0
    %595 = vmatprep.subr.bf16.mxu0 0
    %596 = vmatpush1.bf16.msra.mxu0 0
    %597 = vmatprep.subr.bf16.mxu0 0
    %598 = vmatpush1.bf16.msra.mxu0 0
    %599 = vmatprep.subr.bf16.mxu0 0
    %600 = vmatpush1.bf16.msra.mxu0 0
    %601 = vmatprep.subr.bf16.mxu0 0
    %602 = vmatpush1.bf16.msra.mxu0 0
    %603 = vmatprep.subr.bf16.mxu0 0
    %604 = vmatpush1.bf16.msra.mxu0 0
    %605 = vmatprep.subr.bf16.mxu0 0
    %606 = vmatpush1.bf16.msra.mxu0 0
    %607 = vmatprep.mubr.bf16.mxu0 0
    %608 = vmatmul.mubr.bf16.gmra.mrb[0].mxu0 %v26
    %v609 = vpop.f32.mrb[0].mxu0
    %v610 = vadd.f32 %v119, %v609
    %v611 = vpop.f32.mrb[0].mxu0
    %v612 = vadd.f32 %v123, %v611
    %v613 = vpop.f32.mrb[0].mxu0
    %v614 = vpop.f32.mrb[0].mxu0
    %615 = vdwg.mxu0
    %v616 = vmax.f32 %v487, 0.0
    %v617 = vmax.f32 %v489, 0.0
    %v618 = vmax.f32 %v528, 0.0
    %v619 = vmax.f32 %v530, 0.0
    %v620 = vmax.f32 %v569, 0.0
    %v621 = vmax.f32 %v571, 0.0
    %v622 = vmax.f32 %v610, 0.0
    %v623 = vmax.f32 %v612, 0.0
    %v624 = vpack.c.bf16 %v616, %v616
    %v625 = vpack.c.bf16 %v617, %v617
    %v626 = vpack.c.bf16 %v618, %v618
    %v627 = vpack.c.bf16 %v619, %v619
    %v628 = vpack.c.bf16 %v620, %v620
    %v629 = vpack.c.bf16 %v621, %v621
    %v630 = vpack.c.bf16 %v622, %v622
    %v631 = vpack.c.bf16 %v623, %v623
    %v632 = vld [vmem:[%s3] sm:$0xf]
    %v633 = vld [vmem:[%s3 + $0x4] sm:$0xf]
    %v634 = vld [vmem:[%s3 + $0x8] sm:$0xf]
    %v635 = vld [vmem:[%s3 + $0xc] sm:$0xf]
    %v636 = vld [vmem:[%s3 + $0x10] sm:$0xf]
    %v637 = vld [vmem:[%s3 + $0x14] sm:$0xf]
    %v638 = vld [vmem:[%s3 + $0x18] sm:$0xf]
    %v639 = vld [vmem:[%s3 + $0x1c] sm:$0xf]
    %v640 = vld [vmem:[%s3 + $0x20] sm:$0xf]
    %v641 = vld [vmem:[%s3 + $0x24] sm:$0xf]
    %v642 = vld [vmem:[%s3 + $0x28] sm:$0xf]
    %v643 = vld [vmem:[%s3 + $0x2c] sm:$0xf]
    %v644 = vld [vmem:[%s3 + $0x30] sm:$0xf]
    %v645 = vld [vmem:[%s3 + $0x34] sm:$0xf]
    %v646 = vld [vmem:[%s3 + $0x38] sm:$0xf]
    %v647 = vld [vmem:[%s3 + $0x3c] sm:$0xf]
    %v648 = vld [vmem:[%s3 + $0x40] sm:$0xf]
    %v649 = vld [vmem:[%s3 + $0x44] sm:$0xf]
    %v650 = vld [vmem:[%s3 + $0x48] sm:$0xf]
    %v651 = vld [vmem:[%s3 + $0x4c] sm:$0xf]
    %v652 = vld [vmem:[%s3 + $0x50] sm:$0xf]
    %v653 = vld [vmem:[%s3 + $0x54] sm:$0xf]
    %v654 = vld [vmem:[%s3 + $0x58] sm:$0xf]
    %v655 = vld [vmem:[%s3 + $0x5c] sm:$0xf]
    %v656 = vld [vmem:[%s3 + $0x60] sm:$0xf]
    %v657 = vld [vmem:[%s3 + $0x64] sm:$0xf]
    %v658 = vld [vmem:[%s3 + $0x68] sm:$0xf]
    %v659 = vld [vmem:[%s3 + $0x6c] sm:$0xf]
    %v660 = vld [vmem:[%s3 + $0x70] sm:$0xf]
    %v661 = vld [vmem:[%s3 + $0x74] sm:$0xf]
    %v662 = vld [vmem:[%s3 + $0x78] sm:$0xf]
    %v663 = vld [vmem:[%s3 + $0x7c] sm:$0xf]
    %v664 = vld [vmem:[%s3 + $0x80] sm:$0xf]
    %v665 = vld [vmem:[%s3 + $0x84] sm:$0xf]
    %v666 = vld [vmem:[%s3 + $0x88] sm:$0xf]
    %v667 = vld [vmem:[%s3 + $0x8c] sm:$0xf]
    %v668 = vld [vmem:[%s3 + $0x90] sm:$0xf]
    %v669 = vld [vmem:[%s3 + $0x94] sm:$0xf]
    %v670 = vld [vmem:[%s3 + $0x98] sm:$0xf]
    %v671 = vld [vmem:[%s3 + $0x9c] sm:$0xf]
    %v672 = vld [vmem:[%s3 + $0xa0] sm:$0xf]
    %v673 = vld [vmem:[%s3 + $0xa4] sm:$0xf]
    %v674 = vld [vmem:[%s3 + $0xa8] sm:$0xf]
    %v675 = vld [vmem:[%s3 + $0xac] sm:$0xf]
    %v676 = vld [vmem:[%s3 + $0xb0] sm:$0xf]
    %v677 = vld [vmem:[%s3 + $0xb4] sm:$0xf]
    %v678 = vld [vmem:[%s3 + $0xb8] sm:$0xf]
    %v679 = vld [vmem:[%s3 + $0xbc] sm:$0xf]
    %v680 = vld [vmem:[%s3 + $0xc0] sm:$0xf]
    %v681 = vld [vmem:[%s3 + $0xc4] sm:$0xf]
    %v682 = vld [vmem:[%s3 + $0xc8] sm:$0xf]
    %v683 = vld [vmem:[%s3 + $0xcc] sm:$0xf]
    %v684 = vld [vmem:[%s3 + $0xd0] sm:$0xf]
    %v685 = vld [vmem:[%s3 + $0xd4] sm:$0xf]
    %v686 = vld [vmem:[%s3 + $0xd8] sm:$0xf]
    %v687 = vld [vmem:[%s3 + $0xdc] sm:$0xf]
    %v688 = vld [vmem:[%s3 + $0xe0] sm:$0xf]
    %v689 = vld [vmem:[%s3 + $0xe4] sm:$0xf]
    %v690 = vld [vmem:[%s3 + $0xe8] sm:$0xf]
    %v691 = vld [vmem:[%s3 + $0xec] sm:$0xf]
    %v692 = vld [vmem:[%s3 + $0xf0] sm:$0xf]
    %v693 = vld [vmem:[%s3 + $0xf4] sm:$0xf]
    %v694 = vld [vmem:[%s3 + $0xf8] sm:$0xf]
    %v695 = vld [vmem:[%s3 + $0xfc] sm:$0xf]
    %v696 = vld [vmem:[%s3 + $0x100] sm:$0xf]
    %v697 = vld [vmem:[%s3 + $0x104] sm:$0xf]
    %v698 = vld [vmem:[%s3 + $0x108] sm:$0xf]
    %v699 = vld [vmem:[%s3 + $0x10c] sm:$0xf]
    %v700 = vld [vmem:[%s3 + $0x110] sm:$0xf]
    %v701 = vld [vmem:[%s3 + $0x114] sm:$0xf]
    %v702 = vld [vmem:[%s3 + $0x118] sm:$0xf]
    %v703 = vld [vmem:[%s3 + $0x11c] sm:$0xf]
    %v704 = vld [vmem:[%s3 + $0x120] sm:$0xf]
    %v705 = vld [vmem:[%s3 + $0x124] sm:$0xf]
    %v706 = vld [vmem:[%s3 + $0x128] sm:$0xf]
    %v707 = vld [vmem:[%s3 + $0x12c] sm:$0xf]
    %v708 = vld [vmem:[%s3 + $0x130] sm:$0xf]
    %v709 = vld [vmem:[%s3 + $0x134] sm:$0xf]
    %v710 = vld [vmem:[%s3 + $0x138] sm:$0xf]
    %v711 = vld [vmem:[%s3 + $0x13c] sm:$0xf]
    %v712 = vld [vmem:[%s3 + $0x140] sm:$0xf]
    %v713 = vld [vmem:[%s3 + $0x144] sm:$0xf]
    %v714 = vld [vmem:[%s3 + $0x148] sm:$0xf]
    %v715 = vld [vmem:[%s3 + $0x14c] sm:$0xf]
    %v716 = vld [vmem:[%s3 + $0x150] sm:$0xf]
    %v717 = vld [vmem:[%s3 + $0x154] sm:$0xf]
    %v718 = vld [vmem:[%s3 + $0x158] sm:$0xf]
    %v719 = vld [vmem:[%s3 + $0x15c] sm:$0xf]
    %v720 = vld [vmem:[%s3 + $0x160] sm:$0xf]
    %v721 = vld [vmem:[%s3 + $0x164] sm:$0xf]
    %v722 = vld [vmem:[%s3 + $0x168] sm:$0xf]
    %v723 = vld [vmem:[%s3 + $0x16c] sm:$0xf]
    %v724 = vld [vmem:[%s3 + $0x170] sm:$0xf]
    %v725 = vld [vmem:[%s3 + $0x174] sm:$0xf]
    %v726 = vld [vmem:[%s3 + $0x178] sm:$0xf]
    %v727 = vld [vmem:[%s3 + $0x17c] sm:$0xf]
    %v728 = vld [vmem:[%s3 + $0x180] sm:$0xf]
    %v729 = vld [vmem:[%s3 + $0x184] sm:$0xf]
    %v730 = vld [vmem:[%s3 + $0x188] sm:$0xf]
    %v731 = vld [vmem:[%s3 + $0x18c] sm:$0xf]
    %v732 = vld [vmem:[%s3 + $0x190] sm:$0xf]
    %v733 = vld [vmem:[%s3 + $0x194] sm:$0xf]
    %v734 = vld [vmem:[%s3 + $0x198] sm:$0xf]
    %v735 = vld [vmem:[%s3 + $0x19c] sm:$0xf]
    %v736 = vld [vmem:[%s3 + $0x1a0] sm:$0xf]
    %v737 = vld [vmem:[%s3 + $0x1a4] sm:$0xf]
    %v738 = vld [vmem:[%s3 + $0x1a8] sm:$0xf]
    %v739 = vld [vmem:[%s3 + $0x1ac] sm:$0xf]
    %v740 = vld [vmem:[%s3 + $0x1b0] sm:$0xf]
    %v741 = vld [vmem:[%s3 + $0x1b4] sm:$0xf]
    %v742 = vld [vmem:[%s3 + $0x1b8] sm:$0xf]
    %v743 = vld [vmem:[%s3 + $0x1bc] sm:$0xf]
    %v744 = vld [vmem:[%s3 + $0x1c0] sm:$0xf]
    %v745 = vld [vmem:[%s3 + $0x1c4] sm:$0xf]
    %v746 = vld [vmem:[%s3 + $0x1c8] sm:$0xf]
    %v747 = vld [vmem:[%s3 + $0x1cc] sm:$0xf]
    %v748 = vld [vmem:[%s3 + $0x1d0] sm:$0xf]
    %v749 = vld [vmem:[%s3 + $0x1d4] sm:$0xf]
    %v750 = vld [vmem:[%s3 + $0x1d8] sm:$0xf]
    %v751 = vld [vmem:[%s3 + $0x1dc] sm:$0xf]
    %v752 = vld [vmem:[%s3 + $0x1e0] sm:$0xf]
    %v753 = vld [vmem:[%s3 + $0x1e4] sm:$0xf]
    %v754 = vld [vmem:[%s3 + $0x1e8] sm:$0xf]
    %v755 = vld [vmem:[%s3 + $0x1ec] sm:$0xf]
    %v756 = vld [vmem:[%s3 + $0x1f0] sm:$0xf]
    %v757 = vld [vmem:[%s3 + $0x1f4] sm:$0xf]
    %v758 = vld [vmem:[%s3 + $0x1f8] sm:$0xf]
    %v759 = vld [vmem:[%s3 + $0x1fc] sm:$0xf]
    %v760 = vstv %s24
    %v889 = vunpack.c.l.b16 %v632
    %v890 = vunpack.c.l.b16 %v633
    %v891 = vunpack.c.l.b16 %v634
    %v892 = vunpack.c.l.b16 %v635
    %v893 = vunpack.c.l.b16 %v636
    %v894 = vunpack.c.l.b16 %v637
    %v895 = vunpack.c.l.b16 %v638
    %v896 = vunpack.c.l.b16 %v639
    %v897 = vunpack.c.l.b16 %v640
    %v898 = vunpack.c.l.b16 %v641
    %v899 = vunpack.c.l.b16 %v642
    %v900 = vunpack.c.l.b16 %v643
    %v901 = vunpack.c.l.b16 %v644
    %v902 = vunpack.c.l.b16 %v645
    %v903 = vunpack.c.l.b16 %v646
    %v904 = vunpack.c.l.b16 %v647
    %v905 = vunpack.c.l.b16 %v648
    %v906 = vunpack.c.l.b16 %v649
    %v907 = vunpack.c.l.b16 %v650
    %v908 = vunpack.c.l.b16 %v651
    %v909 = vunpack.c.l.b16 %v652
    %v910 = vunpack.c.l.b16 %v653
    %v911 = vunpack.c.l.b16 %v654
    %v912 = vunpack.c.l.b16 %v655
    %v913 = vunpack.c.l.b16 %v656
    %v914 = vunpack.c.l.b16 %v657
    %v915 = vunpack.c.l.b16 %v658
    %v916 = vunpack.c.l.b16 %v659
    %v917 = vunpack.c.l.b16 %v660
    %v918 = vunpack.c.l.b16 %v661
    %v919 = vunpack.c.l.b16 %v662
    %v920 = vunpack.c.l.b16 %v663
    %v921 = vunpack.c.l.b16 %v664
    %v922 = vunpack.c.l.b16 %v665
    %v923 = vunpack.c.l.b16 %v666
    %v924 = vunpack.c.l.b16 %v667
    %v925 = vunpack.c.l.b16 %v668
    %v926 = vunpack.c.l.b16 %v669
    %v927 = vunpack.c.l.b16 %v670
    %v928 = vunpack.c.l.b16 %v671
    %v929 = vunpack.c.l.b16 %v672
    %v930 = vunpack.c.l.b16 %v673
    %v931 = vunpack.c.l.b16 %v674
    %v932 = vunpack.c.l.b16 %v675
    %v933 = vunpack.c.l.b16 %v676
    %v934 = vunpack.c.l.b16 %v677
    %v935 = vunpack.c.l.b16 %v678
    %v936 = vunpack.c.l.b16 %v679
    %v937 = vunpack.c.l.b16 %v680
    %v938 = vunpack.c.l.b16 %v681
    %v939 = vunpack.c.l.b16 %v682
    %v940 = vunpack.c.l.b16 %v683
    %v941 = vunpack.c.l.b16 %v684
    %v942 = vunpack.c.l.b16 %v685
    %v943 = vunpack.c.l.b16 %v686
    %v944 = vunpack.c.l.b16 %v687
    %v945 = vunpack.c.l.b16 %v688
    %v946 = vunpack.c.l.b16 %v689
    %v947 = vunpack.c.l.b16 %v690
    %v948 = vunpack.c.l.b16 %v691
    %v949 = vunpack.c.l.b16 %v692
    %v950 = vunpack.c.l.b16 %v693
    %v951 = vunpack.c.l.b16 %v694
    %v952 = vunpack.c.l.b16 %v695
    %v953 = vunpack.c.l.b16 %v696
    %v954 = vunpack.c.l.b16 %v697
    %v955 = vunpack.c.l.b16 %v698
    %v956 = vunpack.c.l.b16 %v699
    %v957 = vunpack.c.l.b16 %v700
    %v958 = vunpack.c.l.b16 %v701
    %v959 = vunpack.c.l.b16 %v702
    %v960 = vunpack.c.l.b16 %v703
    %v961 = vunpack.c.l.b16 %v704
    %v962 = vunpack.c.l.b16 %v705
    %v963 = vunpack.c.l.b16 %v706
    %v964 = vunpack.c.l.b16 %v707
    %v965 = vunpack.c.l.b16 %v708
    %v966 = vunpack.c.l.b16 %v709
    %v967 = vunpack.c.l.b16 %v710
    %v968 = vunpack.c.l.b16 %v711
    %v969 = vunpack.c.l.b16 %v712
    %v970 = vunpack.c.l.b16 %v713
    %v971 = vunpack.c.l.b16 %v714
    %v972 = vunpack.c.l.b16 %v715
    %v973 = vunpack.c.l.b16 %v716
    %v974 = vunpack.c.l.b16 %v717
    %v975 = vunpack.c.l.b16 %v718
    %v976 = vunpack.c.l.b16 %v719
    %v977 = vunpack.c.l.b16 %v720
    %v978 = vunpack.c.l.b16 %v721
    %v979 = vunpack.c.l.b16 %v722
    %v980 = vunpack.c.l.b16 %v723
    %v981 = vunpack.c.l.b16 %v724
    %v982 = vunpack.c.l.b16 %v725
    %v983 = vunpack.c.l.b16 %v726
    %v984 = vunpack.c.l.b16 %v727
    %v985 = vunpack.c.l.b16 %v728
    %v986 = vunpack.c.l.b16 %v729
    %v987 = vunpack.c.l.b16 %v730
    %v988 = vunpack.c.l.b16 %v731
    %v989 = vunpack.c.l.b16 %v732
    %v990 = vunpack.c.l.b16 %v733
    %v991 = vunpack.c.l.b16 %v734
    %v992 = vunpack.c.l.b16 %v735
    %v993 = vunpack.c.l.b16 %v736
    %v994 = vunpack.c.l.b16 %v737
    %v995 = vunpack.c.l.b16 %v738
    %v996 = vunpack.c.l.b16 %v739
    %v997 = vunpack.c.l.b16 %v740
    %v998 = vunpack.c.l.b16 %v741
    %v999 = vunpack.c.l.b16 %v742
    %v1000 = vunpack.c.l.b16 %v743
    %v1001 = vunpack.c.l.b16 %v744
    %v1002 = vunpack.c.l.b16 %v745
    %v1003 = vunpack.c.l.b16 %v746
    %v1004 = vunpack.c.l.b16 %v747
    %v1005 = vunpack.c.l.b16 %v748
    %v1006 = vunpack.c.l.b16 %v749
    %v1007 = vunpack.c.l.b16 %v750
    %v1008 = vunpack.c.l.b16 %v751
    %v1009 = vunpack.c.l.b16 %v752
    %v1010 = vunpack.c.l.b16 %v753
    %v1011 = vunpack.c.l.b16 %v754
    %v1012 = vunpack.c.l.b16 %v755
    %v1013 = vunpack.c.l.b16 %v756
    %v1014 = vunpack.c.l.b16 %v757
    %v1015 = vunpack.c.l.b16 %v758
    %v1016 = vunpack.c.l.b16 %v759
    %v1017 = vpack.c.b16 %v890, %v889
    %v1018 = vpack.c.b16 %v892, %v891
    %v1019 = vpack.c.b16 %v894, %v893
    %v1020 = vpack.c.b16 %v896, %v895
    %v1021 = vpack.c.b16 %v898, %v897
    %v1022 = vpack.c.b16 %v900, %v899
    %v1023 = vpack.c.b16 %v902, %v901
    %v1024 = vpack.c.b16 %v904, %v903
    %v1025 = vpack.c.b16 %v906, %v905
    %v1026 = vpack.c.b16 %v908, %v907
    %v1027 = vpack.c.b16 %v910, %v909
    %v1028 = vpack.c.b16 %v912, %v911
    %v1029 = vpack.c.b16 %v914, %v913
    %v1030 = vpack.c.b16 %v916, %v915
    %v1031 = vpack.c.b16 %v918, %v917
    %v1032 = vpack.c.b16 %v920, %v919
    %v1033 = vpack.c.b16 %v922, %v921
    %v1034 = vpack.c.b16 %v924, %v923
    %v1035 = vpack.c.b16 %v926, %v925
    %v1036 = vpack.c.b16 %v928, %v927
    %v1037 = vpack.c.b16 %v930, %v929
    %v1038 = vpack.c.b16 %v932, %v931
    %v1039 = vpack.c.b16 %v934, %v933
    %v1040 = vpack.c.b16 %v936, %v935
    %v1041 = vpack.c.b16 %v938, %v937
    %v1042 = vpack.c.b16 %v940, %v939
    %v1043 = vpack.c.b16 %v942, %v941
    %v1044 = vpack.c.b16 %v944, %v943
    %v1045 = vpack.c.b16 %v946, %v945
    %v1046 = vpack.c.b16 %v948, %v947
    %v1047 = vpack.c.b16 %v950, %v949
    %v1048 = vpack.c.b16 %v952, %v951
    %v1049 = vpack.c.b16 %v954, %v953
    %v1050 = vpack.c.b16 %v956, %v955
    %v1051 = vpack.c.b16 %v958, %v957
    %v1052 = vpack.c.b16 %v960, %v959
    %v1053 = vpack.c.b16 %v962, %v961
    %v1054 = vpack.c.b16 %v964, %v963
    %v1055 = vpack.c.b16 %v966, %v965
    %v1056 = vpack.c.b16 %v968, %v967
    %v1057 = vpack.c.b16 %v970, %v969
    %v1058 = vpack.c.b16 %v972, %v971
    %v1059 = vpack.c.b16 %v974, %v973
    %v1060 = vpack.c.b16 %v976, %v975
    %v1061 = vpack.c.b16 %v978, %v977
    %v1062 = vpack.c.b16 %v980, %v979
    %v1063 = vpack.c.b16 %v982, %v981
    %v1064 = vpack.c.b16 %v984, %v983
    %v1065 = vpack.c.b16 %v986, %v985
    %v1066 = vpack.c.b16 %v988, %v987
    %v1067 = vpack.c.b16 %v990, %v989
    %v1068 = vpack.c.b16 %v992, %v991
    %v1069 = vpack.c.b16 %v994, %v993
    %v1070 = vpack.c.b16 %v996, %v995
    %v1071 = vpack.c.b16 %v998, %v997
    %v1072 = vpack.c.b16 %v1000, %v999
    %v1073 = vpack.c.b16 %v1002, %v1001
    %v1074 = vpack.c.b16 %v1004, %v1003
    %v1075 = vpack.c.b16 %v1006, %v1005
    %v1076 = vpack.c.b16 %v1008, %v1007
    %v1077 = vpack.c.b16 %v1010, %v1009
    %v1078 = vpack.c.b16 %v1012, %v1011
    %v1079 = vpack.c.b16 %v1014, %v1013
    %v1080 = vpack.c.b16 %v1016, %v1015
    %1145 = vmatprep.subr.bf16.mxu0 0
    %1146 = vmatpush1.bf16.msra.mxu0 %v1017
    %1147 = vmatprep.subr.bf16.mxu0 0
    %1148 = vmatpush1.bf16.msra.mxu0 %v1018
    %1149 = vmatprep.subr.bf16.mxu0 0
    %1150 = vmatpush1.bf16.msra.mxu0 %v1019
    %1151 = vmatprep.subr.bf16.mxu0 0
    %1152 = vmatpush1.bf16.msra.mxu0 %v1020
    %1153 = vmatprep.subr.bf16.mxu0 0
    %1154 = vmatpush1.bf16.msra.mxu0 %v1021
    %1155 = vmatprep.subr.bf16.mxu0 0
    %1156 = vmatpush1.bf16.msra.mxu0 %v1022
    %1157 = vmatprep.subr.bf16.mxu0 0
    %1158 = vmatpush1.bf16.msra.mxu0 %v1023
    %1159 = vmatprep.subr.bf16.mxu0 0
    %1160 = vmatpush1.bf16.msra.mxu0 %v1024
    %1161 = vmatprep.subr.bf16.mxu0 0
    %1162 = vmatpush1.bf16.msra.mxu0 %v1025
    %1163 = vmatprep.subr.bf16.mxu0 0
    %1164 = vmatpush1.bf16.msra.mxu0 %v1026
    %1165 = vmatprep.subr.bf16.mxu0 0
    %1166 = vmatpush1.bf16.msra.mxu0 %v1027
    %1167 = vmatprep.subr.bf16.mxu0 0
    %1168 = vmatpush1.bf16.msra.mxu0 %v1028
    %1169 = vmatprep.subr.bf16.mxu0 0
    %1170 = vmatpush1.bf16.msra.mxu0 %v1029
    %1171 = vmatprep.subr.bf16.mxu0 0
    %1172 = vmatpush1.bf16.msra.mxu0 %v1030
    %1173 = vmatprep.subr.bf16.mxu0 0
    %1174 = vmatpush1.bf16.msra.mxu0 %v1031
    %1175 = vmatprep.subr.bf16.mxu0 0
    %1176 = vmatpush1.bf16.msra.mxu0 %v1032
    %1177 = vmatprep.mubr.bf16.mxu0 %v625
    %1178 = vmatmul.mubr.bf16.gmra.mrb[0].mxu0 %v624
    %v1179 = vpop.f32.mrb[0].mxu0
    %v1180 = vadd.f32 %v760, %v1179
    %v1181 = vpop.f32.mrb[0].mxu0
    %v1182 = vpop.f32.mrb[0].mxu0
    %v1183 = vpop.f32.mrb[0].mxu0
    %1184 = vdwg.mxu0
    %1185 = vmatprep.subr.bf16.mxu0 0
    %1186 = vmatpush1.bf16.msra.mxu0 %v1033
    %1187 = vmatprep.subr.bf16.mxu0 0
    %1188 = vmatpush1.bf16.msra.mxu0 %v1034
    %1189 = vmatprep.subr.bf16.mxu0 0
    %1190 = vmatpush1.bf16.msra.mxu0 %v1035
    %1191 = vmatprep.subr.bf16.mxu0 0
    %1192 = vmatpush1.bf16.msra.mxu0 %v1036
    %1193 = vmatprep.subr.bf16.mxu0 0
    %1194 = vmatpush1.bf16.msra.mxu0 %v1037
    %1195 = vmatprep.subr.bf16.mxu0 0
    %1196 = vmatpush1.bf16.msra.mxu0 %v1038
    %1197 = vmatprep.subr.bf16.mxu0 0
    %1198 = vmatpush1.bf16.msra.mxu0 %v1039
    %1199 = vmatprep.subr.bf16.mxu0 0
    %1200 = vmatpush1.bf16.msra.mxu0 %v1040
    %1201 = vmatprep.subr.bf16.mxu0 0
    %1202 = vmatpush1.bf16.msra.mxu0 %v1041
    %1203 = vmatprep.subr.bf16.mxu0 0
    %1204 = vmatpush1.bf16.msra.mxu0 %v1042
    %1205 = vmatprep.subr.bf16.mxu0 0
    %1206 = vmatpush1.bf16.msra.mxu0 %v1043
    %1207 = vmatprep.subr.bf16.mxu0 0
    %1208 = vmatpush1.bf16.msra.mxu0 %v1044
    %1209 = vmatprep.subr.bf16.mxu0 0
    %1210 = vmatpush1.bf16.msra.mxu0 %v1045
    %1211 = vmatprep.subr.bf16.mxu0 0
    %1212 = vmatpush1.bf16.msra.mxu0 %v1046
    %1213 = vmatprep.subr.bf16.mxu0 0
    %1214 = vmatpush1.bf16.msra.mxu0 %v1047
    %1215 = vmatprep.subr.bf16.mxu0 0
    %1216 = vmatpush1.bf16.msra.mxu0 %v1048
    %1217 = vmatprep.mubr.bf16.mxu0 %v627
    %1218 = vmatmul.mubr.bf16.gmra.mrb[0].mxu0 %v626
    %v1219 = vpop.f32.mrb[0].mxu0
    %v1220 = vadd.f32 %v1180, %v1219
    %v1221 = vpop.f32.mrb[0].mxu0
    %v1222 = vpop.f32.mrb[0].mxu0
    %v1223 = vpop.f32.mrb[0].mxu0
    %1224 = vdwg.mxu0
    %1225 = vmatprep.subr.bf16.mxu0 0
    %1226 = vmatpush1.bf16.msra.mxu0 %v1049
    %1227 = vmatprep.subr.bf16.mxu0 0
    %1228 = vmatpush1.bf16.msra.mxu0 %v1050
    %1229 = vmatprep.subr.bf16.mxu0 0
    %1230 = vmatpush1.bf16.msra.mxu0 %v1051
    %1231 = vmatprep.subr.bf16.mxu0 0
    %1232 = vmatpush1.bf16.msra.mxu0 %v1052
    %1233 = vmatprep.subr.bf16.mxu0 0
    %1234 = vmatpush1.bf16.msra.mxu0 %v1053
    %1235 = vmatprep.subr.bf16.mxu0 0
    %1236 = vmatpush1.bf16.msra.mxu0 %v1054
    %1237 = vmatprep.subr.bf16.mxu0 0
    %1238 = vmatpush1.bf16.msra.mxu0 %v1055
    %1239 = vmatprep.subr.bf16.mxu0 0
    %1240 = vmatpush1.bf16.msra.mxu0 %v1056
    %1241 = vmatprep.subr.bf16.mxu0 0
    %1242 = vmatpush1.bf16.msra.mxu0 %v1057
    %1243 = vmatprep.subr.bf16.mxu0 0
    %1244 = vmatpush1.bf16.msra.mxu0 %v1058
    %1245 = vmatprep.subr.bf16.mxu0 0
    %1246 = vmatpush1.bf16.msra.mxu0 %v1059
    %1247 = vmatprep.subr.bf16.mxu0 0
    %1248 = vmatpush1.bf16.msra.mxu0 %v1060
    %1249 = vmatprep.subr.bf16.mxu0 0
    %1250 = vmatpush1.bf16.msra.mxu0 %v1061
    %1251 = vmatprep.subr.bf16.mxu0 0
    %1252 = vmatpush1.bf16.msra.mxu0 %v1062
    %1253 = vmatprep.subr.bf16.mxu0 0
    %1254 = vmatpush1.bf16.msra.mxu0 %v1063
    %1255 = vmatprep.subr.bf16.mxu0 0
    %1256 = vmatpush1.bf16.msra.mxu0 %v1064
    %1257 = vmatprep.mubr.bf16.mxu0 %v629
    %1258 = vmatmul.mubr.bf16.gmra.mrb[0].mxu0 %v628
    %v1259 = vpop.f32.mrb[0].mxu0
    %v1260 = vadd.f32 %v1220, %v1259
    %v1261 = vpop.f32.mrb[0].mxu0
    %v1262 = vpop.f32.mrb[0].mxu0
    %v1263 = vpop.f32.mrb[0].mxu0
    %1264 = vdwg.mxu0
    %1265 = vmatprep.subr.bf16.mxu0 0
    %1266 = vmatpush1.bf16.msra.mxu0 %v1065
    %1267 = vmatprep.subr.bf16.mxu0 0
    %1268 = vmatpush1.bf16.msra.mxu0 %v1066
    %1269 = vmatprep.subr.bf16.mxu0 0
    %1270 = vmatpush1.bf16.msra.mxu0 %v1067
    %1271 = vmatprep.subr.bf16.mxu0 0
    %1272 = vmatpush1.bf16.msra.mxu0 %v1068
    %1273 = vmatprep.subr.bf16.mxu0 0
    %1274 = vmatpush1.bf16.msra.mxu0 %v1069
    %1275 = vmatprep.subr.bf16.mxu0 0
    %1276 = vmatpush1.bf16.msra.mxu0 %v1070
    %1277 = vmatprep.subr.bf16.mxu0 0
    %1278 = vmatpush1.bf16.msra.mxu0 %v1071
    %1279 = vmatprep.subr.bf16.mxu0 0
    %1280 = vmatpush1.bf16.msra.mxu0 %v1072
    %1281 = vmatprep.subr.bf16.mxu0 0
    %1282 = vmatpush1.bf16.msra.mxu0 %v1073
    %1283 = vmatprep.subr.bf16.mxu0 0
    %1284 = vmatpush1.bf16.msra.mxu0 %v1074
    %1285 = vmatprep.subr.bf16.mxu0 0
    %1286 = vmatpush1.bf16.msra.mxu0 %v1075
    %1287 = vmatprep.subr.bf16.mxu0 0
    %1288 = vmatpush1.bf16.msra.mxu0 %v1076
    %1289 = vmatprep.subr.bf16.mxu0 0
    %1290 = vmatpush1.bf16.msra.mxu0 %v1077
    %1291 = vmatprep.subr.bf16.mxu0 0
    %1292 = vmatpush1.bf16.msra.mxu0 %v1078
    %1293 = vmatprep.subr.bf16.mxu0 0
    %1294 = vmatpush1.bf16.msra.mxu0 %v1079
    %1295 = vmatprep.subr.bf16.mxu0 0
    %1296 = vmatpush1.bf16.msra.mxu0 %v1080
    %1297 = vmatprep.mubr.bf16.mxu0 %v631
    %1298 = vmatmul.mubr.bf16.gmra.mrb[0].mxu0 %v630
    %v1299 = vpop.f32.mrb[0].mxu0
    %v1300 = vadd.f32 %v1260, %v1299
    %v1301 = vpop.f32.mrb[0].mxu0
    %v1302 = vpop.f32.mrb[0].mxu0
    %v1303 = vpop.f32.mrb[0].mxu0
    %1304 = vdwg.mxu0
    %vm1305 = vcmask 261120
    %1306 = vst.msk [vmem:[#allocation3] sm:$0xff] %vm1305, %v1300
    // Predicated region
    $region22: #{tpu_custom_call.1} parent=1 // pred_check
      _
    $region23: #{tpu_custom_call.1} parent=1 // pred_check_branch
      %1308 = sbr.rel (0) target = $region25
    $region24: #{tpu_custom_call.1} parent=1 // pred_region
      %s1310 = ssub.s32 128, 16
      %1311 = vsyncadd [#allocation4], %s1310
      %s1312 = sshll.u32 [#allocation3], 4
      %s1313 = int_to_ptr.vmem [resolvable:$true] %s1312
      %1318 = dma.vmem_to_hbm [thread:$0]  %s1313, 16, %s5, [#allocation4], 16, 16, 1
    $region25: #{tpu_custom_call.1} parent=1 // pred_fallthru
      _
    // Predicated region
    $region26: #{tpu_custom_call.1} parent=1 // pred_check
      _
    $region27: #{tpu_custom_call.1} parent=1 // pred_check_branch
      %1320 = sbr.rel (0) target = $region29
    $region28: #{tpu_custom_call.1} parent=1 // pred_region
      %1321 = dma.done [#allocation4], 128
    $region29: #{tpu_custom_call.1} parent=1 // pred_fallthru
      _
    %1322 = vsyncpa [#allocation4], 1

</llo_original>
